<compile_context>
chip_gen: v7x
topology: tpu7x:2x2x1
jax: 0.10.0
libtpu: 0.0.40
codegen_flags: <defaults>
</compile_context>

<pallas_src>
import functools

import jax
import jax.numpy as jnp
from jax.experimental import pallas as pl
from jax.experimental.pallas import tpu as pltpu


def _round_up(n, m):
    return ((n + m - 1) // m) * m


def _ff_kernel(x_ref, w1_ref, b1_ref, w2_ref, b2_ref, o_ref):
    # x_ref: (TM, dim), w1_ref: (dim, 2*hidden), b1_ref: (1, 2*hidden)
    # w2_ref: (hidden, dim), b2_ref: (1, dim), o_ref: (TM, dim)
    x = x_ref[...]

    # First linear: native-dtype operands, f32 accumulation on the MXU.
    h = jnp.dot(x, w1_ref[...], preferred_element_type=jnp.float32)
    h = h + b1_ref[...].astype(jnp.float32)

    # GEGLU: chunk along last axis, exact-erf GELU on the gate half (f32, EUP).
    hidden = h.shape[-1] // 2
    a = h[:, :hidden]
    g = h[:, hidden:]
    inv_sqrt2 = jnp.float32(0.7071067811865476)
    gelu_g = 0.5 * g * (1.0 + jax.lax.erf(g * inv_sqrt2))
    u = a * gelu_g

    # Dropout(p=0.0) is identity at inference -> no-op.

    # Second linear: cast intermediate back to weight dtype (bf16 -> full MXU
    # rate; f32 stays f32), accumulate in f32.
    y = jnp.dot(u.astype(w2_ref.dtype), w2_ref[...],
                preferred_element_type=jnp.float32)
    y = y + b2_ref[...].astype(jnp.float32)
    o_ref[...] = y.astype(o_ref.dtype)


@functools.partial(jax.jit, static_argnames=("block_rows",))
def feedforward(x, w1, b1, w2, b2, *, block_rows=512):
    """x: (B, S, dim). Returns (B, S, dim)."""
    B, S, D = x.shape
    M = B * S
    x2 = x.reshape(M, D)
    b1_2d = b1.reshape(1, -1)
    b2_2d = b2.reshape(1, -1)

    # Row-tile size: multiple of 8 (sublane), capped for tiny inputs.
    TM = min(block_rows, _round_up(M, 8))
    M_pad = _round_up(M, TM)
    if M_pad != M:
        x2 = jnp.pad(x2, ((0, M_pad - M), (0, 0)))
    n_tiles = M_pad // TM

    out = pl.pallas_call(
        _ff_kernel,
        out_shape=jax.ShapeDtypeStruct((M_pad, D), x.dtype),
        grid=(n_tiles,),
        in_specs=[
            pl.BlockSpec((TM, D), lambda i: (i, 0)),          # x: streams
            pl.BlockSpec(w1.shape, lambda i: (0, 0)),          # weights: resident
            pl.BlockSpec(b1_2d.shape, lambda i: (0, 0)),
            pl.BlockSpec(w2.shape, lambda i: (0, 0)),
            pl.BlockSpec(b2_2d.shape, lambda i: (0, 0)),
        ],
        out_specs=pl.BlockSpec((TM, D), lambda i: (i, 0)),     # out: streams
        compiler_params=pltpu.CompilerParams(
            dimension_semantics=("parallel",),                 # megacore on v7x
            vmem_limit_bytes=96 * 1024 * 1024),
    )(x2, w1, b1_2d, w2, b2_2d)

    if M_pad != M:
        out = out[:M]
    return out.reshape(B, S, D)


def _reference(x, w1, b1, w2, b2):
    h = jnp.dot(x, w1) + b1
    a, g = jnp.split(h, 2, axis=-1)
    u = a * (0.5 * g * (1.0 + jax.lax.erf(g / jnp.sqrt(2.0))))
    return jnp.dot(u, w2) + b2


if __name__ == "__main__":
    # Small shapes consistent with the module: (batch=2, seq=8, dim=32), mult=4.
    B, S, DIM, MULT = 2, 8, 32, 4
    HIDDEN = DIM * MULT  # 128

    key = jax.random.PRNGKey(0)
    k_x, k_w1, k_b1, k_w2, k_b2 = jax.random.split(key, 5)

    x = jax.random.normal(k_x, (B, S, DIM), dtype=jnp.float32)
    # Deterministic parameter init (scaled like nn.Linear's uniform init bound).
    w1 = jax.random.uniform(k_w1, (DIM, HIDDEN * 2), jnp.float32,
                            -1.0 / jnp.sqrt(DIM), 1.0 / jnp.sqrt(DIM))
    b1 = jax.random.uniform(k_b1, (HIDDEN * 2,), jnp.float32,
                            -1.0 / jnp.sqrt(DIM), 1.0 / jnp.sqrt(DIM))
    w2 = jax.random.uniform(k_w2, (HIDDEN, DIM), jnp.float32,
                            -1.0 / jnp.sqrt(HIDDEN), 1.0 / jnp.sqrt(HIDDEN))
    b2 = jax.random.uniform(k_b2, (DIM,), jnp.float32,
                            -1.0 / jnp.sqrt(HIDDEN), 1.0 / jnp.sqrt(HIDDEN))

    y = feedforward(x, w1, b1, w2, b2)
    jax.block_until_ready(y)

    y_ref = _reference(x, w1, b1, w2, b2)
    assert y.shape == (B, S, DIM)
    assert jnp.allclose(y, y_ref, atol=1e-5, rtol=1e-5), "mismatch vs reference"

    print("KERNEL_OK")
</pallas_src>

<mosaic_0001>
module attributes {stable_mosaic.version = 11 : i64} {
  func.func @_ff_kernel(%arg0: i32, %arg1: memref<16x32xf32, #tpu.memory_space<vmem>>, %arg2: memref<32x256xf32, #tpu.memory_space<vmem>>, %arg3: memref<1x256xf32, #tpu.memory_space<vmem>>, %arg4: memref<128x32xf32, #tpu.memory_space<vmem>>, %arg5: memref<1x32xf32, #tpu.memory_space<vmem>>, %arg6: memref<16x32xf32, #tpu.memory_space<vmem>>) attributes {dimension_semantics = [#tpu.dimension_semantics<parallel>], iteration_bounds = array<i64: 1>, scalar_prefetch = 0 : i64, scratch_operands = 0 : i64, tpu.core_type = #tpu.core_type<tc>, window_params = [{transform_indices = @transform_0, window_bounds = array<i64: 16, 32>}, {pipeline_mode = #tpu.pipeline_mode<synchronous>, transform_indices = @transform_1, window_bounds = array<i64: 32, 256>}, {pipeline_mode = #tpu.pipeline_mode<synchronous>, transform_indices = @transform_2, window_bounds = array<i64: 1, 256>}, {pipeline_mode = #tpu.pipeline_mode<synchronous>, transform_indices = @transform_3, window_bounds = array<i64: 128, 32>}, {pipeline_mode = #tpu.pipeline_mode<synchronous>, transform_indices = @transform_4, window_bounds = array<i64: 1, 32>}, {transform_indices = @transform_5, window_bounds = array<i64: 16, 32>}]} {
    %c0 = arith.constant 0 : index
    %c0_0 = arith.constant 0 : index
    %0 = vector.load %arg1[%c0, %c0_0] : memref<16x32xf32, #tpu.memory_space<vmem>>, vector<16x32xf32>
    %c0_1 = arith.constant 0 : index
    %c0_2 = arith.constant 0 : index
    %1 = vector.load %arg2[%c0_1, %c0_2] : memref<32x256xf32, #tpu.memory_space<vmem>>, vector<32x256xf32>
    %cst = arith.constant dense<0.000000e+00> : vector<16x256xf32>
    %2 = tpu.matmul %0, %1, %cst {dimension_numbers = #tpu.dot_dimension_numbers<[1], [0], [0], [1], [0, 0, 1, 1], [], []>} : vector<16x32xf32>, vector<32x256xf32>, vector<16x256xf32> -> vector<16x256xf32>
    %c0_3 = arith.constant 0 : index
    %c0_4 = arith.constant 0 : index
    %3 = vector.load %arg3[%c0_3, %c0_4] : memref<1x256xf32, #tpu.memory_space<vmem>>, vector<1x256xf32>
    %4 = vector.broadcast %3 : vector<1x256xf32> to vector<16x256xf32>
    %5 = arith.addf %2, %4 : vector<16x256xf32>
    %6 = vector.extract_strided_slice %5 {offsets = [0, 0], sizes = [16, 128], strides = [1, 1]} : vector<16x256xf32> to vector<16x128xf32>
    %7 = vector.extract_strided_slice %5 {offsets = [0, 128], sizes = [16, 128], strides = [1, 1]} : vector<16x256xf32> to vector<16x128xf32>
    %cst_5 = arith.constant 5.000000e-01 : f32
    %8 = vector.broadcast %cst_5 : f32 to vector<16x128xf32>
    %9 = arith.mulf %8, %7 : vector<16x128xf32>
    %cst_6 = arith.constant 0.707106769 : f32
    %10 = vector.broadcast %cst_6 : f32 to vector<16x128xf32>
    %11 = arith.mulf %7, %10 : vector<16x128xf32>
    %12 = math.erf %11 : vector<16x128xf32>
    %cst_7 = arith.constant 1.000000e+00 : f32
    %13 = vector.broadcast %cst_7 : f32 to vector<16x128xf32>
    %14 = arith.addf %13, %12 : vector<16x128xf32>
    %15 = arith.mulf %9, %14 : vector<16x128xf32>
    %16 = arith.mulf %6, %15 : vector<16x128xf32>
    %c0_8 = arith.constant 0 : index
    %c0_9 = arith.constant 0 : index
    %17 = vector.load %arg4[%c0_8, %c0_9] : memref<128x32xf32, #tpu.memory_space<vmem>>, vector<128x32xf32>
    %cst_10 = arith.constant dense<0.000000e+00> : vector<16x32xf32>
    %18 = tpu.matmul %16, %17, %cst_10 {dimension_numbers = #tpu.dot_dimension_numbers<[1], [0], [0], [1], [0, 0, 1, 1], [], []>} : vector<16x128xf32>, vector<128x32xf32>, vector<16x32xf32> -> vector<16x32xf32>
    %c0_11 = arith.constant 0 : index
    %c0_12 = arith.constant 0 : index
    %19 = vector.load %arg5[%c0_11, %c0_12] : memref<1x32xf32, #tpu.memory_space<vmem>>, vector<1x32xf32>
    %20 = vector.broadcast %19 : vector<1x32xf32> to vector<16x32xf32>
    %21 = arith.addf %18, %20 : vector<16x32xf32>
    %c0_13 = arith.constant 0 : index
    %c0_14 = arith.constant 0 : index
    %22 = vector.load %arg6[%c0_13, %c0_14] : memref<16x32xf32, #tpu.memory_space<vmem>>, vector<16x32xf32>
    tpu.vector_store %arg6[%c0_13, %c0_14], %21 {strides = array<i32>} : memref<16x32xf32, #tpu.memory_space<vmem>>, vector<16x32xf32>,
    return
  }
  func.func @transform_0(%arg0: i32) -> (i32, i32) {
    %c0_i32 = arith.constant 0 : i32
    %c0_i32_0 = arith.constant 0 : i32
    return %arg0, %c0_i32 : i32, i32
  }
  func.func @transform_1(%arg0: i32) -> (i32, i32) {
    %c0_i32 = arith.constant 0 : i32
    %c0_i32_0 = arith.constant 0 : i32
    %c0_i32_1 = arith.constant 0 : i32
    return %c0_i32, %c0_i32_0 : i32, i32
  }
  func.func @transform_2(%arg0: i32) -> (i32, i32) {
    %c0_i32 = arith.constant 0 : i32
    %c0_i32_0 = arith.constant 0 : i32
    %c0_i32_1 = arith.constant 0 : i32
    return %c0_i32, %c0_i32_0 : i32, i32
  }
  func.func @transform_3(%arg0: i32) -> (i32, i32) {
    %c0_i32 = arith.constant 0 : i32
    %c0_i32_0 = arith.constant 0 : i32
    %c0_i32_1 = arith.constant 0 : i32
    return %c0_i32, %c0_i32_0 : i32, i32
  }
  func.func @transform_4(%arg0: i32) -> (i32, i32) {
    %c0_i32 = arith.constant 0 : i32
    %c0_i32_0 = arith.constant 0 : i32
    %c0_i32_1 = arith.constant 0 : i32
    return %c0_i32, %c0_i32_0 : i32, i32
  }
  func.func @transform_5(%arg0: i32) -> (i32, i32) {
    %c0_i32 = arith.constant 0 : i32
    %c0_i32_0 = arith.constant 0 : i32
    return %arg0, %c0_i32 : i32, i32
  }
}

</mosaic_0001>

<llo_original>
// kernel: feedforward.1
$region0: #{feedforward.1}
  #allocation0 [shape = 'u32[]', space=smem, size = 0x4, offset = 0x4, fixed_abs, tag = 'smem constant byte address 0x4 - core index']
  #allocation1 [shape = 'u32[144,128]{1,0:T(1,128)}', space=vmem, size = 0x12000, scoped, tag = 'internal scratch']
  %s0 = inlined_call_operand.hbm [shape: f32[16,32], index: 0, kind: input, shape index: {}]
  %s1 = inlined_call_operand.hbm [shape: f32[32,256], index: 1, kind: input, shape index: {}]
  %s2 = inlined_call_operand.hbm [shape: f32[1,256], index: 2, kind: input, shape index: {}]
  %s3 = inlined_call_operand.hbm [shape: f32[128,32], index: 3, kind: input, shape index: {}]
  %s4 = inlined_call_operand.hbm [shape: f32[1,32], index: 4, kind: input, shape index: {}]
  %s5 = inlined_call_operand.hbm [shape: f32[16,32], index: 5, kind: output, shape index: {}]
  %s6 = sld [smem:[#allocation0]]
  $region50: #{feedforward.1} parent=0
    _
  %s8 = ssub.s32 1, %s6
  %s9 = scalar_select 0, %s8, %s6
  $region1: #{feedforward.1} parent=0
    #allocation2 [shape = 'u8[8192]{0}', space=vmem, size = 0x2000, scoped, tag = 'input window, operand 0, single buffered']
    #allocation3 [shape = 's32[1]{0}', space=sflag, size = 0x4, scoped, tag = 'scoped memory for feedforward.1']
    #allocation4 [shape = 's32[1]{0}', space=sflag, size = 0x4, scoped, tag = 'scoped memory for feedforward.1']
    #allocation5 [shape = 'u8[32768]{0}', space=vmem, size = 0x8000, scoped, tag = 'input window, operand 1, single buffered']
    #allocation6 [shape = 's32[1]{0}', space=sflag, size = 0x4, scoped, tag = 'scoped memory for feedforward.1']
    #allocation7 [shape = 'u8[1024]{0}', space=vmem, size = 0x400, scoped, tag = 'input window, operand 2, single buffered']
    #allocation8 [shape = 'u8[65536]{0}', space=vmem, size = 0x10000, scoped, tag = 'input window, operand 3, single buffered']
    #allocation9 [shape = 's32[1]{0}', space=sflag, size = 0x4, scoped, tag = 'scoped memory for feedforward.1']
    #allocation10 [shape = 'u8[512]{0}', space=vmem, size = 0x400, scoped, tag = 'input window, operand 4, single buffered']
    #allocation11 [shape = 'u8[8192]{0}', space=vmem, size = 0x2000, scoped, tag = 'output window, operand 0, single buffered']
    %10 = vsyncpa [#allocation3], 0
    %11 = vsyncpa [#allocation6], 0
    %12 = vsyncpa [#allocation9], 0
    %13 = vsyncpa [#allocation4], 0
    // Predicated region
    $region2: #{feedforward.1} parent=1 // pred_check
      _
    $region3: #{feedforward.1} parent=1 // pred_check_branch
      %15 = sbr.rel (0) target = $region5
    $region4: #{feedforward.1} parent=1 // pred_region
      %s17 = ssub.s32 256, 256
      %18 = vsyncadd [#allocation3], %s17
      %s19 = sshll.u32 [#allocation2], 4
      %s20 = int_to_ptr.vmem [resolvable:$true] %s19
      %25 = dma.hbm_to_vmem [thread:$0]  %s0, 256, %s20, [#allocation3], 128, 128, 8
    $region5: #{feedforward.1} parent=1 // pred_fallthru
      _
    // Predicated region
    $region6: #{feedforward.1} parent=1 // pred_check
      _
    $region7: #{feedforward.1} parent=1 // pred_check_branch
      %27 = sbr.rel (0) target = $region9
    $region8: #{feedforward.1} parent=1 // pred_region
      %s29 = ssub.s32 1024, 1024
      %30 = vsyncadd [#allocation6], %s29
      %s31 = sshll.u32 [#allocation5], 4
      %s32 = int_to_ptr.vmem [resolvable:$true] %s31
      %37 = dma.hbm_to_vmem [thread:$0]  %s1, 1024, %s32, [#allocation6], 256, 256, 16
    $region9: #{feedforward.1} parent=1 // pred_fallthru
      _
    // Predicated region
    $region10: #{feedforward.1} parent=1 // pred_check
      _
    $region11: #{feedforward.1} parent=1 // pred_check_branch
      %39 = sbr.rel (0) target = $region13
    $region12: #{feedforward.1} parent=1 // pred_region
      %s41 = ssub.s32 32, 32
      %42 = vsyncadd [#allocation6], %s41
      %s44 = sshll.u32 [#allocation7], 4
      %s45 = int_to_ptr.vmem [resolvable:$true] %s44
      %47 = dma.hbm_to_vmem [thread:$0]  %s2, 32, %s45, [#allocation6]
    $region13: #{feedforward.1} parent=1 // pred_fallthru
      _
    // Predicated region
    $region14: #{feedforward.1} parent=1 // pred_check
      _
    $region15: #{feedforward.1} parent=1 // pred_check_branch
      %49 = sbr.rel (0) target = $region17
    $region16: #{feedforward.1} parent=1 // pred_region
      %s51 = ssub.s32 2048, 2048
      %52 = vsyncadd [#allocation9], %s51
      %s53 = sshll.u32 [#allocation8], 4
      %s54 = int_to_ptr.vmem [resolvable:$true] %s53
      %59 = dma.hbm_to_vmem [thread:$0]  %s3, 2048, %s54, [#allocation9], 128, 128, 8
    $region17: #{feedforward.1} parent=1 // pred_fallthru
      _
    // Predicated region
    $region18: #{feedforward.1} parent=1 // pred_check
      _
    $region19: #{feedforward.1} parent=1 // pred_check_branch
      %61 = sbr.rel (0) target = $region21
    $region20: #{feedforward.1} parent=1 // pred_region
      %s63 = ssub.s32 16, 16
      %64 = vsyncadd [#allocation9], %s63
      %s66 = sshll.u32 [#allocation10], 4
      %s67 = int_to_ptr.vmem [resolvable:$true] %s66
      %69 = dma.hbm_to_vmem [thread:$0]  %s4, 16, %s67, [#allocation9]
    $region21: #{feedforward.1} parent=1 // pred_fallthru
      _
    // Predicated region
    $region22: #{feedforward.1} parent=1 // pred_check
      _
    $region23: #{feedforward.1} parent=1 // pred_check_branch
      %71 = sbr.rel (0) target = $region25
    $region24: #{feedforward.1} parent=1 // pred_region
      %72 = dma.done [#allocation3], 256
    $region25: #{feedforward.1} parent=1 // pred_fallthru
      _
    // Predicated region
    $region26: #{feedforward.1} parent=1 // pred_check
      _
    $region27: #{feedforward.1} parent=1 // pred_check_branch
      %74 = sbr.rel (0) target = $region29
    $region28: #{feedforward.1} parent=1 // pred_region
      %75 = dma.done [#allocation6], 1024
    $region29: #{feedforward.1} parent=1 // pred_fallthru
      _
    // Predicated region
    $region30: #{feedforward.1} parent=1 // pred_check
      _
    $region31: #{feedforward.1} parent=1 // pred_check_branch
      %77 = sbr.rel (0) target = $region33
    $region32: #{feedforward.1} parent=1 // pred_region
      %78 = dma.done [#allocation6], 32
    $region33: #{feedforward.1} parent=1 // pred_fallthru
      _
    // Predicated region
    $region34: #{feedforward.1} parent=1 // pred_check
      _
    $region35: #{feedforward.1} parent=1 // pred_check_branch
      %80 = sbr.rel (0) target = $region37
    $region36: #{feedforward.1} parent=1 // pred_region
      %81 = dma.done [#allocation9], 2048
    $region37: #{feedforward.1} parent=1 // pred_fallthru
      _
    // Predicated region
    $region38: #{feedforward.1} parent=1 // pred_check
      _
    $region39: #{feedforward.1} parent=1 // pred_check_branch
      %83 = sbr.rel (0) target = $region41
    $region40: #{feedforward.1} parent=1 // pred_region
      %84 = dma.done [#allocation9], 16
    $region41: #{feedforward.1} parent=1 // pred_fallthru
      _
    %v85 = vld [vmem:[#allocation2] sm:$0xff]
    %v86 = vld [vmem:[#allocation2 + $0x8] sm:$0xff]
    %v87 = vld [vmem:[#allocation5] sm:$0xff]
    %v88 = vld [vmem:[#allocation5 + $0x8] sm:$0xff]
    %v89 = vld [vmem:[#allocation5 + $0x10] sm:$0xff]
    %v90 = vld [vmem:[#allocation5 + $0x18] sm:$0xff]
    %v91 = vld [vmem:[#allocation5 + $0x20] sm:$0xff]
    %v92 = vld [vmem:[#allocation5 + $0x28] sm:$0xff]
    %v93 = vld [vmem:[#allocation5 + $0x30] sm:$0xff]
    %v94 = vld [vmem:[#allocation5 + $0x38] sm:$0xff]
    %v95 = vld [vmem:[#allocation7] sm:$0x3]
    %v97 = vlaneseq
    %v98 = vshrl.u32 %v97, 7
    %v99 = vsub.s32 0, %v98
    %v100 = vrot.slane %v95, %v99
    %v101 = vlaneseq
    %v102 = vshrl.u32 %v101, 7
    %v103 = vsub.s32 1, %v102
    %v104 = vrot.slane %v95, %v103
    %vm107 = vcmask 261120
    %v109 = vsel %vm107, %v85, 0
    %v112 = vsel %vm107, %v86, 0
    %114 = vmatprep.subr.mxu0 %v88
    %115 = vmatpush1.msra.mxu0 %v87
    %116 = vmatprep.subr.mxu0 %v90
    %117 = vmatpush1.msra.mxu0 %v89
    %118 = vmatprep.subr.mxu0 %v92
    %119 = vmatpush1.msra.mxu0 %v91
    %120 = vmatprep.subr.mxu0 %v94
    %121 = vmatpush1.msra.mxu0 %v93
    %122 = vmatprep.subr.mxu0 0.0
    %123 = vmatpush1.msra.mxu0 0.0
    %124 = vmatprep.subr.mxu0 0.0
    %125 = vmatpush1.msra.mxu0 0.0
    %126 = vmatprep.subr.mxu0 0.0
    %127 = vmatpush1.msra.mxu0 0.0
    %128 = vmatprep.subr.mxu0 0.0
    %129 = vmatpush1.msra.mxu0 0.0
    %130 = vmatprep.subr.mxu0 0.0
    %131 = vmatpush1.msra.mxu0 0.0
    %132 = vmatprep.subr.mxu0 0.0
    %133 = vmatpush1.msra.mxu0 0.0
    %134 = vmatprep.subr.mxu0 0.0
    %135 = vmatpush1.msra.mxu0 0.0
    %136 = vmatprep.subr.mxu0 0.0
    %137 = vmatpush1.msra.mxu0 0.0
    %138 = vmatprep.subr.mxu0 0.0
    %139 = vmatpush1.msra.mxu0 0.0
    %140 = vmatprep.subr.mxu0 0.0
    %141 = vmatpush1.msra.mxu0 0.0
    %142 = vmatprep.subr.mxu0 0.0
    %143 = vmatpush1.msra.mxu0 0.0
    %144 = vmatprep.subr.mxu0 0.0
    %145 = vmatpush1.msra.mxu0 0.0
    %146 = vmatprep.subr.mxu0 0.0
    %147 = vmatpush1.msra.mxu0 0.0
    %148 = vmatprep.subr.mxu0 0.0
    %149 = vmatpush1.msra.mxu0 0.0
    %150 = vmatprep.subr.mxu0 0.0
    %151 = vmatpush1.msra.mxu0 0.0
    %152 = vmatprep.subr.mxu0 0.0
    %153 = vmatpush1.msra.mxu0 0.0
    %154 = vmatprep.subr.mxu0 0.0
    %155 = vmatpush1.msra.mxu0 0.0
    %156 = vmatprep.subr.mxu0 0.0
    %157 = vmatpush1.msra.mxu0 0.0
    %158 = vmatprep.subr.mxu0 0.0
    %159 = vmatpush1.msra.mxu0 0.0
    %160 = vmatprep.subr.mxu0 0.0
    %161 = vmatpush1.msra.mxu0 0.0
    %162 = vmatprep.subr.mxu0 0.0
    %163 = vmatpush1.msra.mxu0 0.0
    %164 = vmatprep.subr.mxu0 0.0
    %165 = vmatpush1.msra.mxu0 0.0
    %166 = vmatprep.subr.mxu0 0.0
    %167 = vmatpush1.msra.mxu0 0.0
    %168 = vmatprep.subr.mxu0 0.0
    %169 = vmatpush1.msra.mxu0 0.0
    %170 = vmatprep.subr.mxu0 0.0
    %171 = vmatpush1.msra.mxu0 0.0
    %172 = vmatprep.subr.mxu0 0.0
    %173 = vmatpush1.msra.mxu0 0.0
    %174 = vmatprep.subr.mxu0 0.0
    %175 = vmatpush1.msra.mxu0 0.0
    %176 = vmatprep.subr.mxu0 0.0
    %177 = vmatpush1.msra.mxu0 0.0
    %178 = vmatprep.mubr.f32.mxu0 0.0
    %179 = vmatmul.mubr.f32.gmra.mrb[0].mxu0 %v109
    %v180 = vpop.f32.mrb[0].mxu0
    %v181 = vadd.f32 %v100, %v180
    %v182 = vpop.f32.mrb[0].mxu0
    %v183 = vadd.f32 %v104, %v182
    %184 = vmatprep.mubr.f32.mxu0 0.0
    %185 = vmatmul.mubr.f32.gmra.mrb[0].mxu0 %v112
    %v186 = vpop.f32.mrb[0].mxu0
    %v187 = vadd.f32 %v100, %v186
    %v188 = vpop.f32.mrb[0].mxu0
    %v189 = vadd.f32 %v104, %v188
    %190 = vdwg.mxu0
    %v191 = vmul.f32 %v183, 0.5
    %v192 = vmul.f32 %v189, 0.5
    %v193 = vmul.f32 %v183, 0.70710677
    %v194 = vmul.f32 %v189, 0.70710677
    %v195 = verf.f32.pop %v193
    %v196 = verf.f32.pop %v194
    %v197 = vadd.f32 %v195, 1.0
    %v198 = vadd.f32 %v196, 1.0
    %v199 = vmul.f32 %v191, %v197
    %v200 = vmul.f32 %v192, %v198
    %v201 = vmul.f32 %v181, %v199
    %v202 = vmul.f32 %v187, %v200
    %v203 = vld [vmem:[#allocation8] sm:$0xff]
    %v204 = vld [vmem:[#allocation8 + $0x8] sm:$0xff]
    %v205 = vld [vmem:[#allocation8 + $0x10] sm:$0xff]
    %v206 = vld [vmem:[#allocation8 + $0x18] sm:$0xff]
    %v207 = vld [vmem:[#allocation8 + $0x20] sm:$0xff]
    %v208 = vld [vmem:[#allocation8 + $0x28] sm:$0xff]
    %v209 = vld [vmem:[#allocation8 + $0x30] sm:$0xff]
    %v210 = vld [vmem:[#allocation8 + $0x38] sm:$0xff]
    %v211 = vld [vmem:[#allocation8 + $0x40] sm:$0xff]
    %v212 = vld [vmem:[#allocation8 + $0x48] sm:$0xff]
    %v213 = vld [vmem:[#allocation8 + $0x50] sm:$0xff]
    %v214 = vld [vmem:[#allocation8 + $0x58] sm:$0xff]
    %v215 = vld [vmem:[#allocation8 + $0x60] sm:$0xff]
    %v216 = vld [vmem:[#allocation8 + $0x68] sm:$0xff]
    %v217 = vld [vmem:[#allocation8 + $0x70] sm:$0xff]
    %v218 = vld [vmem:[#allocation8 + $0x78] sm:$0xff]
    %v219 = vld [vmem:[#allocation10] sm:$0x1]
    %v221 = vlaneseq
    %v222 = vshrl.u32 %v221, 7
    %v223 = vsub.s32 0, %v222
    %v224 = vrot.slane %v219, %v223
    %226 = vmatprep.subr.mxu0 0.0
    %227 = vmatpush1.msra.mxu0 %v203
    %228 = vmatprep.subr.mxu0 0.0
    %229 = vmatpush1.msra.mxu0 %v204
    %230 = vmatprep.subr.mxu0 0.0
    %231 = vmatpush1.msra.mxu0 %v205
    %232 = vmatprep.subr.mxu0 0.0
    %233 = vmatpush1.msra.mxu0 %v206
    %234 = vmatprep.subr.mxu0 0.0
    %235 = vmatpush1.msra.mxu0 %v207
    %236 = vmatprep.subr.mxu0 0.0
    %237 = vmatpush1.msra.mxu0 %v208
    %238 = vmatprep.subr.mxu0 0.0
    %239 = vmatpush1.msra.mxu0 %v209
    %240 = vmatprep.subr.mxu0 0.0
    %241 = vmatpush1.msra.mxu0 %v210
    %242 = vmatprep.subr.mxu0 0.0
    %243 = vmatpush1.msra.mxu0 %v211
    %244 = vmatprep.subr.mxu0 0.0
    %245 = vmatpush1.msra.mxu0 %v212
    %246 = vmatprep.subr.mxu0 0.0
    %247 = vmatpush1.msra.mxu0 %v213
    %248 = vmatprep.subr.mxu0 0.0
    %249 = vmatpush1.msra.mxu0 %v214
    %250 = vmatprep.subr.mxu0 0.0
    %251 = vmatpush1.msra.mxu0 %v215
    %252 = vmatprep.subr.mxu0 0.0
    %253 = vmatpush1.msra.mxu0 %v216
    %254 = vmatprep.subr.mxu0 0.0
    %255 = vmatpush1.msra.mxu0 %v217
    %256 = vmatprep.subr.mxu0 0.0
    %257 = vmatpush1.msra.mxu0 %v218
    %258 = vmatprep.subr.mxu0 0.0
    %259 = vmatpush1.msra.mxu0 0.0
    %260 = vmatprep.subr.mxu0 0.0
    %261 = vmatpush1.msra.mxu0 0.0
    %262 = vmatprep.subr.mxu0 0.0
    %263 = vmatpush1.msra.mxu0 0.0
    %264 = vmatprep.subr.mxu0 0.0
    %265 = vmatpush1.msra.mxu0 0.0
    %266 = vmatprep.subr.mxu0 0.0
    %267 = vmatpush1.msra.mxu0 0.0
    %268 = vmatprep.subr.mxu0 0.0
    %269 = vmatpush1.msra.mxu0 0.0
    %270 = vmatprep.subr.mxu0 0.0
    %271 = vmatpush1.msra.mxu0 0.0
    %272 = vmatprep.subr.mxu0 0.0
    %273 = vmatpush1.msra.mxu0 0.0
    %274 = vmatprep.subr.mxu0 0.0
    %275 = vmatpush1.msra.mxu0 0.0
    %276 = vmatprep.subr.mxu0 0.0
    %277 = vmatpush1.msra.mxu0 0.0
    %278 = vmatprep.subr.mxu0 0.0
    %279 = vmatpush1.msra.mxu0 0.0
    %280 = vmatprep.subr.mxu0 0.0
    %281 = vmatpush1.msra.mxu0 0.0
    %282 = vmatprep.subr.mxu0 0.0
    %283 = vmatpush1.msra.mxu0 0.0
    %284 = vmatprep.subr.mxu0 0.0
    %285 = vmatpush1.msra.mxu0 0.0
    %286 = vmatprep.subr.mxu0 0.0
    %287 = vmatpush1.msra.mxu0 0.0
    %288 = vmatprep.subr.mxu0 0.0
    %289 = vmatpush1.msra.mxu0 0.0
    %290 = vmatprep.mubr.f32.mxu0 0.0
    %291 = vmatmul.mubr.f32.gmra.mrb[0].mxu0 %v201
    %v292 = vpop.f32.mrb[0].mxu0
    %v293 = vadd.f32 %v224, %v292
    %v294 = vpop.f32.mrb[0].mxu0
    %295 = vmatprep.mubr.f32.mxu0 0.0
    %296 = vmatmul.mubr.f32.gmra.mrb[0].mxu0 %v202
    %v297 = vpop.f32.mrb[0].mxu0
    %v298 = vadd.f32 %v224, %v297
    %v299 = vpop.f32.mrb[0].mxu0
    %300 = vdwg.mxu0
    %301 = vst.msk [vmem:[#allocation11] sm:$0xff] %vm107, %v293
    %302 = vst.msk [vmem:[#allocation11 + $0x8] sm:$0xff] %vm107, %v298
    // Predicated region
    $region42: #{feedforward.1} parent=1 // pred_check
      _
    $region43: #{feedforward.1} parent=1 // pred_check_branch
      %304 = sbr.rel (0) target = $region45
    $region44: #{feedforward.1} parent=1 // pred_region
      %s306 = ssub.s32 256, 256
      %307 = vsyncadd [#allocation4], %s306
      %s308 = sshll.u32 [#allocation11], 4
      %s309 = int_to_ptr.vmem [resolvable:$true] %s308
      %314 = dma.vmem_to_hbm [thread:$0]  %s309, 256, %s5, [#allocation4], 128, 128, 8
    $region45: #{feedforward.1} parent=1 // pred_fallthru
      _
    // Predicated region
    $region46: #{feedforward.1} parent=1 // pred_check
      _
    $region47: #{feedforward.1} parent=1 // pred_check_branch
      %316 = sbr.rel (0) target = $region49
    $region48: #{feedforward.1} parent=1 // pred_region
      %317 = dma.done [#allocation4], 256
    $region49: #{feedforward.1} parent=1 // pred_fallthru
      _
    %318 = vsyncpa [#allocation3], 1
    %319 = vsyncpa [#allocation6], 1
    %320 = vsyncpa [#allocation9], 1
    %321 = vsyncpa [#allocation4], 1

</llo_original>
